<compile_context>
chip_gen: v6e
topology: v6e:2x2x1
jax: 0.10.0
libtpu: 0.0.40
codegen_flags: <defaults>
</compile_context>

<pallas_src>
import jax
import jax.numpy as jnp
import numpy as np
from jax.experimental import pallas as pl
from jax.experimental.pallas import tpu as pltpu

FP8_DTYPE = jnp.float8_e4m3fn
FP8_MAX = 448.0          # finfo(float8_e4m3fn).max (vLLM's FP8_DTYPE on most HW)
EPS = 1e-6               # RMSNorm eps
HIDDEN = 128
TOKENS = 16


def _is_v7x():
    """True if the default device looks like a TPU v7x (fp8 MXU, 2 TCs)."""
    try:
        kind = jax.devices()[0].device_kind.lower()
    except Exception:
        return False
    return ("v7" in kind) or ("7x" in kind) or ("tpu7" in kind)


def _rmsnorm(x, g, eps):
    # vLLM RMSNorm: x * rsqrt(mean(x^2) + eps) * weight   (computed in f32)
    var = jnp.mean(x * x, axis=-1, keepdims=True)
    return x * jax.lax.rsqrt(var + eps) * g            # rsqrt -> EUP slot


def _fp8_linear(y, w, wsc_over_max, mxu_dtype):
    # Fp8LinearOp with dynamic per-token activation quantization:
    #   x_scale = amax(|y|, row) / fp8_max ; q = fp8(y / x_scale)
    #   out     = (q @ w_q) * x_scale * w_scale
    amax = jnp.maximum(jnp.max(jnp.abs(y), axis=-1, keepdims=True), 1e-12)
    inv = FP8_MAX / amax                                # exact per-row divide
    q = jnp.clip(y * inv, -FP8_MAX, FP8_MAX)
    q = q.astype(FP8_DTYPE)                             # fp8-e4m3 round
    if mxu_dtype != FP8_DTYPE:
        # v5e/v6e: MXU takes bf16 (fp8 values are exactly representable)
        q = q.astype(mxu_dtype)
    out = jnp.dot(q, w, preferred_element_type=jnp.float32)
    # fused per-token * per-tensor scale; wsc_over_max = wscale / FP8_MAX (host)
    return out * (amax * wsc_over_max)


def _make_kernel(H, mxu_dtype):
    def kernel(wsc_ref, x_ref, g_ref, w_ref, o_ref):
        x = x_ref[...]                                  # [TB, H] f32
        resid = jnp.sqrt(x)                             # matches torch.sqrt(x)

        g0 = g_ref[0:1, :]                              # static row views
        g1 = g_ref[1:2, :]
        g2 = g_ref[2:3, :]
        w0 = w_ref[:, :H]                               # static lane slices
        w1 = w_ref[:, H:]                               # (128-aligned, no copy)

        # RMSNorm #0 + fp8 linear #0
        y = _rmsnorm(x, g0, EPS)
        x2 = _fp8_linear(y, w0, wsc_ref[0], mxu_dtype)
        # fused add + RMSNorm #1 + fp8 linear #1
        resid = x2 + resid
        y2 = _rmsnorm(resid, g1, EPS)
        x3 = _fp8_linear(y2, w1, wsc_ref[1], mxu_dtype)
        # fused add + RMSNorm #2
        resid = x3 + resid
        y3 = _rmsnorm(resid, g2, EPS)

        o_ref[...] = y3.astype(o_ref.dtype)
    return kernel


def _pick_token_block(T, *, two_tc=False):
    if T <= 32:
        return T                       # single grid step: latency-bound regime
    if two_tc and T % 2 == 0 and (T // 2) % 8 == 0 and T <= 2048:
        return T // 2                  # 2-step parallel grid -> both v7x TCs
    cap = 512                          # amortize ~0.35us/step overhead
    start = min(T, cap)
    start -= start % 8
    for tb in range(start, 7, -8):
        if T % tb == 0:
            return tb
    return T


def test_model_forward(x, gammas, w0, w1, wscales, *, token_block=None,
                       two_tc=None):
    T, H = x.shape
    assert gammas.shape == (3, H)
    assert w0.shape == (H, H) and w1.shape == (H, H)
    assert w0.dtype == w1.dtype
    mxu_dtype = w0.dtype

    if two_tc is None:
        two_tc = _is_v7x()
    if token_block is None:
        token_block = _pick_token_block(T, two_tc=two_tc)
    assert T % token_block == 0, "T must be a multiple of token_block"
    grid = (T // token_block,)

    # one weight DMA instead of two (lane-concat; sliced in-kernel)
    w_cat = jnp.concatenate([w0, w1], axis=1)           # (H, 2H)
    # precompute wscale / FP8_MAX on the host -> single fused scale in-kernel
    wsc_over_max = (wscales / FP8_MAX).astype(jnp.float32)

    return pl.pallas_call(
        _make_kernel(H, mxu_dtype),
        out_shape=jax.ShapeDtypeStruct((T, H), jnp.float32),
        grid_spec=pltpu.PrefetchScalarGridSpec(
            num_scalar_prefetch=0,
            grid=grid,
            in_specs=[
                pl.BlockSpec(memory_space=pltpu.MemorySpace.SMEM),   # wsc [2]
                pl.BlockSpec((token_block, H), lambda i: (i, 0)),    # x tokens
                pl.BlockSpec((3, H), lambda i: (0, 0)),              # gammas
                pl.BlockSpec((H, 2 * H), lambda i: (0, 0)),          # w0 || w1
            ],
            out_specs=pl.BlockSpec((token_block, H), lambda i: (i, 0)),
        ),
        compiler_params=pltpu.CompilerParams(
            dimension_semantics=("parallel",)),
    )(wsc_over_max, x, gammas, w_cat)


# ---------------------------------------------------------------------------
# pure-JAX reference (same math as the kernel; f32 dot)
# ---------------------------------------------------------------------------
def _fp8_linear_ref(y, w_f32, wsc):
    amax = jnp.maximum(jnp.max(jnp.abs(y), axis=-1, keepdims=True), 1e-12)
    inv = FP8_MAX / amax
    q = jnp.clip(y * inv, -FP8_MAX, FP8_MAX)
    q = q.astype(FP8_DTYPE).astype(jnp.float32)
    out = jnp.dot(q, w_f32, preferred_element_type=jnp.float32)
    return out * (amax * (wsc / FP8_MAX))


def reference(x, gammas, w0_f32, w1_f32, wscales):
    resid = jnp.sqrt(x)
    y = _rmsnorm(x, gammas[0:1], EPS)
    x2 = _fp8_linear_ref(y, w0_f32, wscales[0])
    resid = x2 + resid
    y2 = _rmsnorm(resid, gammas[1:2], EPS)
    x3 = _fp8_linear_ref(y2, w1_f32, wscales[1])
    resid = x3 + resid
    return _rmsnorm(resid, gammas[2:3], EPS)


if __name__ == "__main__":
    key = jax.random.PRNGKey(0)
    kx, kw0, kw1, ks = jax.random.split(key, 4)

    # torch test uses positive inputs (forward contains sqrt(x))
    x = jax.random.uniform(kx, (TOKENS, HIDDEN), dtype=jnp.float32)

    # RMSNorm weights are initialized to ones in vLLM's RMSNorm
    gammas = jnp.ones((3, HIDDEN), dtype=jnp.float32)

    # w = torch.rand(H, H).to(FP8).t()  -> fp8-rounded values, transposed
    def make_w_fp8(k):
        w = jax.random.uniform(k, (HIDDEN, HIDDEN), dtype=jnp.float32)
        return w.astype(FP8_DTYPE).T

    w0_fp8 = make_w_fp8(kw0)
    w1_fp8 = make_w_fp8(kw1)

    # per-tensor weight scales: torch.rand(1) each
    wscales = jax.random.uniform(ks, (2,), dtype=jnp.float32)

    native_fp8 = _is_v7x()

    def run(use_fp8_mxu):
        # v7x: native fp8 operands; v5e/v6e: bf16 (exact for fp8 values)
        mxu_dt = FP8_DTYPE if use_fp8_mxu else jnp.bfloat16
        out = test_model_forward(x, gammas,
                                 w0_fp8.astype(mxu_dt), w1_fp8.astype(mxu_dt),
                                 wscales, two_tc=use_fp8_mxu)
        return jax.block_until_ready(out)

    try:
        out = run(native_fp8)
    except Exception:
        if not native_fp8:
            raise
        out = run(False)        # safe bf16 fallback if fp8 MXU path rejected

    ref = reference(x, gammas,
                    w0_fp8.astype(jnp.float32), w1_fp8.astype(jnp.float32),
                    wscales)
    np.testing.assert_allclose(np.asarray(out), np.asarray(ref),
                               rtol=2e-2, atol=2e-2)
    print("KERNEL_OK")
</pallas_src>

<mosaic_0001>
module attributes {stable_mosaic.version = 11 : i64} {
  func.func @kernel(%arg0: i32, %arg1: memref<2xf32, #tpu.memory_space<smem>>, %arg2: memref<16x128xf32, #tpu.memory_space<vmem>>, %arg3: memref<3x128xf32, #tpu.memory_space<vmem>>, %arg4: memref<128x256xbf16, #tpu.memory_space<vmem>>, %arg5: memref<16x128xf32, #tpu.memory_space<vmem>>) attributes {dimension_semantics = [#tpu.dimension_semantics<parallel>], iteration_bounds = array<i64: 1>, scalar_prefetch = 0 : i64, scratch_operands = 0 : i64, tpu.core_type = #tpu.core_type<tc>, window_params = [{transform_indices = @transform_0, window_bounds = array<i64: 2>}, {transform_indices = @transform_1, window_bounds = array<i64: 16, 128>}, {pipeline_mode = #tpu.pipeline_mode<synchronous>, transform_indices = @transform_2, window_bounds = array<i64: 3, 128>}, {pipeline_mode = #tpu.pipeline_mode<synchronous>, transform_indices = @transform_3, window_bounds = array<i64: 128, 256>}, {transform_indices = @transform_4, window_bounds = array<i64: 16, 128>}]} {
    %c0 = arith.constant 0 : index
    %c0_0 = arith.constant 0 : index
    %0 = vector.load %arg2[%c0, %c0_0] : memref<16x128xf32, #tpu.memory_space<vmem>>, vector<16x128xf32>
    %1 = math.sqrt %0 : vector<16x128xf32>
    %c0_1 = arith.constant 0 : index
    %c0_2 = arith.constant 0 : index
    %2 = vector.load %arg3[%c0_1, %c0_2] : memref<3x128xf32, #tpu.memory_space<vmem>>, vector<1x128xf32>
    %c1 = arith.constant 1 : index
    %c0_3 = arith.constant 0 : index
    %3 = vector.load %arg3[%c1, %c0_3] : memref<3x128xf32, #tpu.memory_space<vmem>>, vector<1x128xf32>
    %c2 = arith.constant 2 : index
    %c0_4 = arith.constant 0 : index
    %4 = vector.load %arg3[%c2, %c0_4] : memref<3x128xf32, #tpu.memory_space<vmem>>, vector<1x128xf32>
    %c0_5 = arith.constant 0 : index
    %c0_6 = arith.constant 0 : index
    %5 = vector.load %arg4[%c0_5, %c0_6] : memref<128x256xbf16, #tpu.memory_space<vmem>>, vector<128x128xbf16>
    %c0_7 = arith.constant 0 : index
    %c128 = arith.constant 128 : index
    %6 = vector.load %arg4[%c0_7, %c128] : memref<128x256xbf16, #tpu.memory_space<vmem>>, vector<128x128xbf16>
    %7 = arith.mulf %0, %0 : vector<16x128xf32>
    %cst = arith.constant dense<0.000000e+00> : vector<16xf32>
    %8 = vector.multi_reduction <add>, %7, %cst [1] : vector<16x128xf32> to vector<16xf32>
    %9 = vector.shape_cast %8 : vector<16xf32> to vector<16x1xf32>
    %cst_8 = arith.constant 1.280000e+02 : f32
    %10 = vector.broadcast %cst_8 : f32 to vector<16x1xf32>
    %11 = arith.divf %9, %10 : vector<16x1xf32>
    %cst_9 = arith.constant 9.99999997E-7 : f32
    %12 = vector.broadcast %cst_9 : f32 to vector<16x1xf32>
    %13 = arith.addf %11, %12 : vector<16x1xf32>
    %14 = math.rsqrt %13 : vector<16x1xf32>
    %15 = vector.broadcast %14 : vector<16x1xf32> to vector<16x128xf32>
    %16 = arith.mulf %0, %15 : vector<16x128xf32>
    %17 = vector.broadcast %2 : vector<1x128xf32> to vector<16x128xf32>
    %18 = arith.mulf %16, %17 : vector<16x128xf32>
    %c0_10 = arith.constant 0 : index
    %19 = memref.load %arg1[%c0_10] : memref<2xf32, #tpu.memory_space<smem>>
    %20 = math.absf %18 : vector<16x128xf32>
    %cst_11 = arith.constant dense<0xFF800000> : vector<16xf32>
    %21 = vector.multi_reduction <maximumf>, %20, %cst_11 [1] : vector<16x128xf32> to vector<16xf32>
    %22 = vector.shape_cast %21 : vector<16xf32> to vector<16x1xf32>
    %cst_12 = arith.constant 9.99999996E-13 : f32
    %23 = vector.broadcast %cst_12 : f32 to vector<16x1xf32>
    %24 = arith.maximumf %22, %23 : vector<16x1xf32>
    %cst_13 = arith.constant 4.480000e+02 : f32
    %25 = vector.broadcast %cst_13 : f32 to vector<16x1xf32>
    %26 = arith.divf %25, %24 : vector<16x1xf32>
    %27 = vector.broadcast %26 : vector<16x1xf32> to vector<16x128xf32>
    %28 = arith.mulf %18, %27 : vector<16x128xf32>
    %cst_14 = arith.constant -4.480000e+02 : f32
    %cst_15 = arith.constant 4.480000e+02 : f32
    %29 = vector.broadcast %cst_14 : f32 to vector<16x128xf32>
    %30 = arith.maximumf %29, %28 : vector<16x128xf32>
    %31 = vector.broadcast %cst_15 : f32 to vector<16x128xf32>
    %32 = arith.minimumf %31, %30 : vector<16x128xf32>
    %33 = arith.truncf %32 : vector<16x128xf32> to vector<16x128xf8E4M3FN>
    %34 = arith.extf %33 : vector<16x128xf8E4M3FN> to vector<16x128xbf16>
    %cst_16 = arith.constant dense<0.000000e+00> : vector<16x128xf32>
    %35 = tpu.matmul %34, %5, %cst_16 {dimension_numbers = #tpu.dot_dimension_numbers<[1], [0], [0], [1], [0, 0, 1, 1], [], []>} : vector<16x128xbf16>, vector<128x128xbf16>, vector<16x128xf32> -> vector<16x128xf32>
    %36 = vector.broadcast %19 : f32 to vector<16x1xf32>
    %37 = arith.mulf %24, %36 : vector<16x1xf32>
    %38 = vector.broadcast %37 : vector<16x1xf32> to vector<16x128xf32>
    %39 = arith.mulf %35, %38 : vector<16x128xf32>
    %40 = arith.addf %39, %1 : vector<16x128xf32>
    %41 = arith.mulf %40, %40 : vector<16x128xf32>
    %cst_17 = arith.constant dense<0.000000e+00> : vector<16xf32>
    %42 = vector.multi_reduction <add>, %41, %cst_17 [1] : vector<16x128xf32> to vector<16xf32>
    %43 = vector.shape_cast %42 : vector<16xf32> to vector<16x1xf32>
    %cst_18 = arith.constant 1.280000e+02 : f32
    %44 = vector.broadcast %cst_18 : f32 to vector<16x1xf32>
    %45 = arith.divf %43, %44 : vector<16x1xf32>
    %cst_19 = arith.constant 9.99999997E-7 : f32
    %46 = vector.broadcast %cst_19 : f32 to vector<16x1xf32>
    %47 = arith.addf %45, %46 : vector<16x1xf32>
    %48 = math.rsqrt %47 : vector<16x1xf32>
    %49 = vector.broadcast %48 : vector<16x1xf32> to vector<16x128xf32>
    %50 = arith.mulf %40, %49 : vector<16x128xf32>
    %51 = vector.broadcast %3 : vector<1x128xf32> to vector<16x128xf32>
    %52 = arith.mulf %50, %51 : vector<16x128xf32>
    %c1_20 = arith.constant 1 : index
    %53 = memref.load %arg1[%c1_20] : memref<2xf32, #tpu.memory_space<smem>>
    %54 = math.absf %52 : vector<16x128xf32>
    %cst_21 = arith.constant dense<0xFF800000> : vector<16xf32>
    %55 = vector.multi_reduction <maximumf>, %54, %cst_21 [1] : vector<16x128xf32> to vector<16xf32>
    %56 = vector.shape_cast %55 : vector<16xf32> to vector<16x1xf32>
    %cst_22 = arith.constant 9.99999996E-13 : f32
    %57 = vector.broadcast %cst_22 : f32 to vector<16x1xf32>
    %58 = arith.maximumf %56, %57 : vector<16x1xf32>
    %cst_23 = arith.constant 4.480000e+02 : f32
    %59 = vector.broadcast %cst_23 : f32 to vector<16x1xf32>
    %60 = arith.divf %59, %58 : vector<16x1xf32>
    %61 = vector.broadcast %60 : vector<16x1xf32> to vector<16x128xf32>
    %62 = arith.mulf %52, %61 : vector<16x128xf32>
    %cst_24 = arith.constant -4.480000e+02 : f32
    %cst_25 = arith.constant 4.480000e+02 : f32
    %63 = vector.broadcast %cst_24 : f32 to vector<16x128xf32>
    %64 = arith.maximumf %63, %62 : vector<16x128xf32>
    %65 = vector.broadcast %cst_25 : f32 to vector<16x128xf32>
    %66 = arith.minimumf %65, %64 : vector<16x128xf32>
    %67 = arith.truncf %66 : vector<16x128xf32> to vector<16x128xf8E4M3FN>
    %68 = arith.extf %67 : vector<16x128xf8E4M3FN> to vector<16x128xbf16>
    %cst_26 = arith.constant dense<0.000000e+00> : vector<16x128xf32>
    %69 = tpu.matmul %68, %6, %cst_26 {dimension_numbers = #tpu.dot_dimension_numbers<[1], [0], [0], [1], [0, 0, 1, 1], [], []>} : vector<16x128xbf16>, vector<128x128xbf16>, vector<16x128xf32> -> vector<16x128xf32>
    %70 = vector.broadcast %53 : f32 to vector<16x1xf32>
    %71 = arith.mulf %58, %70 : vector<16x1xf32>
    %72 = vector.broadcast %71 : vector<16x1xf32> to vector<16x128xf32>
    %73 = arith.mulf %69, %72 : vector<16x128xf32>
    %74 = arith.addf %73, %40 : vector<16x128xf32>
    %75 = arith.mulf %74, %74 : vector<16x128xf32>
    %cst_27 = arith.constant dense<0.000000e+00> : vector<16xf32>
    %76 = vector.multi_reduction <add>, %75, %cst_27 [1] : vector<16x128xf32> to vector<16xf32>
    %77 = vector.shape_cast %76 : vector<16xf32> to vector<16x1xf32>
    %cst_28 = arith.constant 1.280000e+02 : f32
    %78 = vector.broadcast %cst_28 : f32 to vector<16x1xf32>
    %79 = arith.divf %77, %78 : vector<16x1xf32>
    %cst_29 = arith.constant 9.99999997E-7 : f32
    %80 = vector.broadcast %cst_29 : f32 to vector<16x1xf32>
    %81 = arith.addf %79, %80 : vector<16x1xf32>
    %82 = math.rsqrt %81 : vector<16x1xf32>
    %83 = vector.broadcast %82 : vector<16x1xf32> to vector<16x128xf32>
    %84 = arith.mulf %74, %83 : vector<16x128xf32>
    %85 = vector.broadcast %4 : vector<1x128xf32> to vector<16x128xf32>
    %86 = arith.mulf %84, %85 : vector<16x128xf32>
    %c0_30 = arith.constant 0 : index
    %c0_31 = arith.constant 0 : index
    %87 = vector.load %arg5[%c0_30, %c0_31] : memref<16x128xf32, #tpu.memory_space<vmem>>, vector<16x128xf32>
    tpu.vector_store %arg5[%c0_30, %c0_31], %86 {strides = array<i32>} : memref<16x128xf32, #tpu.memory_space<vmem>>, vector<16x128xf32>,
    return
  }
  func.func @transform_0(%arg0: i32) -> i32 {
    %c0_i32 = arith.constant 0 : i32
    %c0_i32_0 = arith.constant 0 : i32
    return %c0_i32 : i32
  }
  func.func @transform_1(%arg0: i32) -> (i32, i32) {
    %c0_i32 = arith.constant 0 : i32
    %c0_i32_0 = arith.constant 0 : i32
    return %arg0, %c0_i32 : i32, i32
  }
  func.func @transform_2(%arg0: i32) -> (i32, i32) {
    %c0_i32 = arith.constant 0 : i32
    %c0_i32_0 = arith.constant 0 : i32
    %c0_i32_1 = arith.constant 0 : i32
    return %c0_i32, %c0_i32_0 : i32, i32
  }
  func.func @transform_3(%arg0: i32) -> (i32, i32) {
    %c0_i32 = arith.constant 0 : i32
    %c0_i32_0 = arith.constant 0 : i32
    %c0_i32_1 = arith.constant 0 : i32
    return %c0_i32, %c0_i32_0 : i32, i32
  }
  func.func @transform_4(%arg0: i32) -> (i32, i32) {
    %c0_i32 = arith.constant 0 : i32
    %c0_i32_0 = arith.constant 0 : i32
    return %arg0, %c0_i32 : i32, i32
  }
}

</mosaic_0001>

<llo_original>
// kernel: tpu_custom_call.1
$region0: #{tpu_custom_call.1}
  #allocation0 [shape = 'u32[]', space=smem, size = 0x4, offset = 0x4, fixed_abs, tag = 'smem constant byte address 0x4 - core index']
  #allocation1 [shape = 'u32[144,128]{1,0:T(1,128)}', space=vmem, size = 0x12000, scoped, tag = 'internal scratch']
  %s0 = inlined_call_operand.hbm [shape: f32[2], index: 0, kind: input, shape index: {}]
  %s1 = inlined_call_operand.hbm [shape: f32[16,128], index: 1, kind: input, shape index: {}]
  %s2 = inlined_call_operand.hbm [shape: f32[3,128], index: 2, kind: input, shape index: {}]
  %s3 = inlined_call_operand.hbm [shape: bf16[128,256], index: 3, kind: input, shape index: {}]
  %s4 = inlined_call_operand.hbm [shape: f32[16,128], index: 4, kind: output, shape index: {}]
  %s5 = sld [smem:[#allocation0]]
  $region46: #{tpu_custom_call.1} parent=0
    _
  %s7 = ssub.s32 1, %s5
  %s8 = scalar_select 0, %s7, %s5
  $region1: #{tpu_custom_call.1} parent=0
    #allocation2 [shape = 'u8[512]{0}', space=smem, size = 0x200, scoped, tag = 'input window, operand 0, single buffered']
    #allocation3 [shape = 's32[1]{0}', space=sflag, size = 0x4, scoped, tag = 'scoped memory for tpu_custom_call.1']
    #allocation4 [shape = 's32[1]{0}', space=sflag, size = 0x4, scoped, tag = 'scoped memory for tpu_custom_call.1']
    #allocation5 [shape = 's32[1]{0}', space=sflag, size = 0x4, scoped, tag = 'scoped memory for tpu_custom_call.1']
    #allocation6 [shape = 'u8[8192]{0}', space=vmem, size = 0x2000, scoped, tag = 'input window, operand 1, single buffered']
    #allocation7 [shape = 'u8[2048]{0}', space=vmem, size = 0x800, scoped, tag = 'input window, operand 2, single buffered']
    #allocation8 [shape = 's32[1]{0}', space=sflag, size = 0x4, scoped, tag = 'scoped memory for tpu_custom_call.1']
    #allocation9 [shape = 'u8[65536]{0}', space=vmem, size = 0x10000, scoped, tag = 'input window, operand 3, single buffered']
    #allocation10 [shape = 'u8[8192]{0}', space=vmem, size = 0x2000, scoped, tag = 'output window, operand 0, single buffered']
    %9 = vsyncpa [#allocation5], 0
    %10 = vsyncpa [#allocation3], 0
    %11 = vsyncpa [#allocation8], 0
    %12 = vsyncpa [#allocation4], 0
    // Predicated region
    $region2: #{tpu_custom_call.1} parent=1 // pred_check
      _
    $region3: #{tpu_custom_call.1} parent=1 // pred_check_branch
      %14 = sbr.rel (0) target = $region5
    $region4: #{tpu_custom_call.1} parent=1 // pred_region
      %s16 = ssub.s32 16, 16
      %17 = vsyncadd [#allocation5], %s16
      %20 = dma.hbm_to_smem %s0, 16, [#allocation2], [#allocation5]
    $region5: #{tpu_custom_call.1} parent=1 // pred_fallthru
      _
    // Predicated region
    $region6: #{tpu_custom_call.1} parent=1 // pred_check
      _
    $region7: #{tpu_custom_call.1} parent=1 // pred_check_branch
      %22 = sbr.rel (0) target = $region9
    $region8: #{tpu_custom_call.1} parent=1 // pred_region
      %s24 = ssub.s32 256, 256
      %25 = vsyncadd [#allocation3], %s24
      %s26 = sshll.u32 [#allocation6], 4
      %s27 = int_to_ptr.vmem [resolvable:$true] %s26
      %32 = dma.hbm_to_vmem [thread:$0]  %s1, 256, %s27, [#allocation3], 128, 128, 8
    $region9: #{tpu_custom_call.1} parent=1 // pred_fallthru
      _
    // Predicated region
    $region10: #{tpu_custom_call.1} parent=1 // pred_check
      _
    $region11: #{tpu_custom_call.1} parent=1 // pred_check_branch
      %34 = sbr.rel (0) target = $region13
    $region12: #{tpu_custom_call.1} parent=1 // pred_region
      %s36 = ssub.s32 64, 64
      %37 = vsyncadd [#allocation8], %s36
      %s39 = sshll.u32 [#allocation7], 4
      %s40 = int_to_ptr.vmem [resolvable:$true] %s39
      %42 = dma.hbm_to_vmem [thread:$0]  %s2, 64, %s40, [#allocation8]
    $region13: #{tpu_custom_call.1} parent=1 // pred_fallthru
      _
    // Predicated region
    $region14: #{tpu_custom_call.1} parent=1 // pred_check
      _
    $region15: #{tpu_custom_call.1} parent=1 // pred_check_branch
      %44 = sbr.rel (0) target = $region17
    $region16: #{tpu_custom_call.1} parent=1 // pred_region
      %s46 = ssub.s32 2048, 2048
      %47 = vsyncadd [#allocation8], %s46
      %s48 = sshll.u32 [#allocation9], 4
      %s49 = int_to_ptr.vmem [resolvable:$true] %s48
      %54 = dma.hbm_to_vmem [thread:$0]  %s3, 2048, %s49, [#allocation8], 128, 128, 8
    $region17: #{tpu_custom_call.1} parent=1 // pred_fallthru
      _
    // Predicated region
    $region18: #{tpu_custom_call.1} parent=1 // pred_check
      _
    $region19: #{tpu_custom_call.1} parent=1 // pred_check_branch
      %56 = sbr.rel (0) target = $region21
    $region20: #{tpu_custom_call.1} parent=1 // pred_region
      %57 = dma.done [#allocation5], 16
    $region21: #{tpu_custom_call.1} parent=1 // pred_fallthru
      _
    // Predicated region
    $region22: #{tpu_custom_call.1} parent=1 // pred_check
      _
    $region23: #{tpu_custom_call.1} parent=1 // pred_check_branch
      %59 = sbr.rel (0) target = $region25
    $region24: #{tpu_custom_call.1} parent=1 // pred_region
      %60 = dma.done [#allocation3], 256
    $region25: #{tpu_custom_call.1} parent=1 // pred_fallthru
      _
    // Predicated region
    $region26: #{tpu_custom_call.1} parent=1 // pred_check
      _
    $region27: #{tpu_custom_call.1} parent=1 // pred_check_branch
      %62 = sbr.rel (0) target = $region29
    $region28: #{tpu_custom_call.1} parent=1 // pred_region
      %63 = dma.done [#allocation8], 64
    $region29: #{tpu_custom_call.1} parent=1 // pred_fallthru
      _
    // Predicated region
    $region30: #{tpu_custom_call.1} parent=1 // pred_check
      _
    $region31: #{tpu_custom_call.1} parent=1 // pred_check_branch
      %65 = sbr.rel (0) target = $region33
    $region32: #{tpu_custom_call.1} parent=1 // pred_region
      %66 = dma.done [#allocation8], 2048
    $region33: #{tpu_custom_call.1} parent=1 // pred_fallthru
      _
    %67 = sfence
    %v69 = vld [vmem:[#allocation6] sm:$0xff]
    %v70 = vld [vmem:[#allocation6 + $0x8] sm:$0xff]
    %v71 = vrsqrt.pop %v69
    %v72 = vmul.f32 %v69, %v71
    %vm73 = vcmp.eq.f32.partialorder %v69, inf
    %v74 = vsel %vm73, %v69, %v72
    %vm75 = vcmp.eq.f32.partialorder %v69, 0.0
    %v76 = vand.u32 %v69, 2147483648
    %v77 = vsel %vm75, %v76, %v74
    %v78 = vrsqrt.pop %v70
    %v79 = vmul.f32 %v70, %v78
    %vm80 = vcmp.eq.f32.partialorder %v70, inf
    %v81 = vsel %vm80, %v70, %v79
    %vm82 = vcmp.eq.f32.partialorder %v70, 0.0
    %v83 = vand.u32 %v70, 2147483648
    %v84 = vsel %vm82, %v83, %v81
    %v85 = vld [vmem:[#allocation7] sm:$0x1]
    %v86 = vld [vmem:[#allocation7 + $0x1] sm:$0x1]
    %v87 = vld [vmem:[#allocation7 + $0x2] sm:$0x1]
    %v88 = vld [vmem:[#allocation9] sm:$0xf]
    %v89 = vld [vmem:[#allocation9 + $0x8] sm:$0xf]
    %v90 = vld [vmem:[#allocation9 + $0x10] sm:$0xf]
    %v91 = vld [vmem:[#allocation9 + $0x18] sm:$0xf]
    %v92 = vld [vmem:[#allocation9 + $0x20] sm:$0xf]
    %v93 = vld [vmem:[#allocation9 + $0x28] sm:$0xf]
    %v94 = vld [vmem:[#allocation9 + $0x30] sm:$0xf]
    %v95 = vld [vmem:[#allocation9 + $0x38] sm:$0xf]
    %v96 = vld [vmem:[#allocation9 + $0x40] sm:$0xf]
    %v97 = vld [vmem:[#allocation9 + $0x48] sm:$0xf]
    %v98 = vld [vmem:[#allocation9 + $0x50] sm:$0xf]
    %v99 = vld [vmem:[#allocation9 + $0x58] sm:$0xf]
    %v100 = vld [vmem:[#allocation9 + $0x60] sm:$0xf]
    %v101 = vld [vmem:[#allocation9 + $0x68] sm:$0xf]
    %v102 = vld [vmem:[#allocation9 + $0x70] sm:$0xf]
    %v103 = vld [vmem:[#allocation9 + $0x78] sm:$0xf]
    %v104 = vld [vmem:[#allocation9 + $0x4] sm:$0xf]
    %v105 = vld [vmem:[#allocation9 + $0xc] sm:$0xf]
    %v106 = vld [vmem:[#allocation9 + $0x14] sm:$0xf]
    %v107 = vld [vmem:[#allocation9 + $0x1c] sm:$0xf]
    %v108 = vld [vmem:[#allocation9 + $0x24] sm:$0xf]
    %v109 = vld [vmem:[#allocation9 + $0x2c] sm:$0xf]
    %v110 = vld [vmem:[#allocation9 + $0x34] sm:$0xf]
    %v111 = vld [vmem:[#allocation9 + $0x3c] sm:$0xf]
    %v112 = vld [vmem:[#allocation9 + $0x44] sm:$0xf]
    %v113 = vld [vmem:[#allocation9 + $0x4c] sm:$0xf]
    %v114 = vld [vmem:[#allocation9 + $0x54] sm:$0xf]
    %v115 = vld [vmem:[#allocation9 + $0x5c] sm:$0xf]
    %v116 = vld [vmem:[#allocation9 + $0x64] sm:$0xf]
    %v117 = vld [vmem:[#allocation9 + $0x6c] sm:$0xf]
    %v118 = vld [vmem:[#allocation9 + $0x74] sm:$0xf]
    %v119 = vld [vmem:[#allocation9 + $0x7c] sm:$0xf]
    %v120 = vmul.f32 %v69, %v69
    %v121 = vmul.f32 %v70, %v70
    %122 = vadd.xlane.f32.xlu0 %v120
    %v123 = vpop.xlane.xlu0 %122
    %124 = vadd.xlane.f32.xlu0 %v121
    %v125 = vpop.xlane.xlu0 %124
    %v126 = vrcp.pop 128.0
    %v127 = vmul.f32 %v123, %v126
    %v128 = vmul.f32 %v125, %v126
    %v129 = vadd.f32 %v127, 1e-06
    %v130 = vadd.f32 %v128, 1e-06
    %v131 = vrsqrt.pop %v129
    %v132 = vrsqrt.pop %v130
    %v133 = vmul.f32 %v69, %v131
    %v134 = vmul.f32 %v70, %v132
    %v135 = vlaneseq
    %v136 = vshrl.u32 %v135, 7
    %v137 = vsub.s32 0, %v136
    %v138 = vrot.slane %v85, %v137
    %v139 = vmul.f32 %v133, %v138
    %v140 = vmul.f32 %v134, %v138
    %s141 = sld [smem:[#allocation2]]
    %v142 = vand.u32 2147483647, %v139
    %v143 = vand.u32 2147483647, %v140
    %144 = vmax.xlane.f32.xlu0 %v142
    %v145 = vpop.xlane.xlu0 %144
    %146 = vmax.xlane.f32.xlu0 %v143
    %v147 = vpop.xlane.xlu0 %146
    %v148 = vmax.f32 %v145, 1e-12
    %v149 = vmax.f32 %v147, 1e-12
    %v150 = vrcp.pop %v148
    %v151 = vmul.f32 448.0, %v150
    %v152 = vrcp.pop %v149
    %v153 = vmul.f32 448.0, %v152
    %v154 = vmul.f32 %v139, %v151
    %v155 = vmul.f32 %v140, %v153
    %v156 = vmax.f32 %v154, -448.0
    %v157 = vmax.f32 %v155, -448.0
    %v158 = vmin.f32 %v156, 448.0
    %v159 = vmin.f32 %v157, 448.0
    %v160 = vand.u32 2147483647, %v158
    %v161 = vand.u32 %v158, 2147483648
    %v163 = vadd.f32 1182793728, %v160
    %v165 = vsub.s32 %v163, 1182793728
    %v166 = vshrl.u32 %v158, 20
    %v167 = vand.u32 %v166, 1
    %v168 = vadd.s32 %v160, 3288858623
    %v169 = vadd.s32 %v168, %v167
    %v170 = vshrl.u32 %v169, 20
    %vm171 = vcmp.lt.s32.totalorder %v160, 1015021568
    %v172 = vsel %vm171, %v165, %v170
    %vm173 = vcmp.ge.s32.totalorder %v160, 1139277825
    %v174 = vsel %vm173, 127, %v172
    %vm175 = vcmp.ne.f32.partialorder %v158, %v158
    %v176 = vsel %vm175, 127, %v174
    %v177 = vshrl.u32 %v161, 24
    %v178 = vor.u32 %v176, %v177
    %v179 = vor.u32 %v178, 4294967040
    %v181 = vand.u32 2147483647, %v159
    %v182 = vand.u32 %v159, 2147483648
    %v184 = vadd.f32 1182793728, %v181
    %v186 = vsub.s32 %v184, 1182793728
    %v187 = vshrl.u32 %v159, 20
    %v188 = vand.u32 %v187, 1
    %v189 = vadd.s32 %v181, 3288858623
    %v190 = vadd.s32 %v189, %v188
    %v191 = vshrl.u32 %v190, 20
    %vm192 = vcmp.lt.s32.totalorder %v181, 1015021568
    %v193 = vsel %vm192, %v186, %v191
    %vm194 = vcmp.ge.s32.totalorder %v181, 1139277825
    %v195 = vsel %vm194, 127, %v193
    %vm196 = vcmp.ne.f32.partialorder %v159, %v159
    %v197 = vsel %vm196, 127, %v195
    %v198 = vshrl.u32 %v182, 24
    %v199 = vor.u32 %v197, %v198
    %v200 = vor.u32 %v199, 4294967040
    %v202 = vpack.c.b16 %v200, %v179
    %v203 = vpack.c.b8 %v202, %v202
    $region34: #{tpu_custom_call.1} parent=1
      #allocation11 [shape = 'u8[4096]{0}', space=vmem, size = 0x1000, scoped, tag = 'scoped memory for tpu_custom_call.1']
      %205 = vst [vmem:[#allocation11] sm:$0xff] %v203
      %v206 = vld [vmem:[#allocation11] sm:$0x3]
      %v207 = vunpack.c.0.f8e4m3b11 %v206
      %v208 = vunpack.c.1.f8e4m3b11 %v206
      %v209 = vunpack.c.2.f8e4m3b11 %v206
      %v210 = vunpack.c.3.f8e4m3b11 %v206
      %v211 = vand.u32 2147483647, %v207
      %vm212 = vcmp.gt.f32.partialorder %v211, 29.0
      %vm213 = vcmp.ne.f32.partialorder %v207, %v207
      %v214 = vmul.f32 %v207, 16.0
      %v215 = vsel %vm213, -0.0, %v214
      %v216 = vsel %vm212, nan, %v215
      %v217 = vand.u32 2147483647, %v208
      %vm218 = vcmp.gt.f32.partialorder %v217, 29.0
      %vm219 = vcmp.ne.f32.partialorder %v208, %v208
      %v220 = vmul.f32 %v208, 16.0
      %v221 = vsel %vm219, -0.0, %v220
      %v222 = vsel %vm218, nan, %v221
      %v223 = vand.u32 2147483647, %v209
      %vm224 = vcmp.gt.f32.partialorder %v223, 29.0
      %vm225 = vcmp.ne.f32.partialorder %v209, %v209
      %v226 = vmul.f32 %v209, 16.0
      %v227 = vsel %vm225, -0.0, %v226
      %v228 = vsel %vm224, nan, %v227
      %v229 = vand.u32 2147483647, %v210
      %vm230 = vcmp.gt.f32.partialorder %v229, 29.0
      %vm231 = vcmp.ne.f32.partialorder %v210, %v210
      %v232 = vmul.f32 %v210, 16.0
      %v233 = vsel %vm231, -0.0, %v232
      %v234 = vsel %vm230, nan, %v233
    $region35: #{tpu_custom_call.1} parent=1
      #allocation12 [shape = 'u8[4096]{0}', space=vmem, size = 0x1000, scoped, tag = 'scoped memory for tpu_custom_call.1']
      %235 = vst [vmem:[#allocation12] sm:$0xff] %v203
      %s236 = scalar_lea.vmem [#allocation12], 2
      %v237 = vld [vmem:[%s236] sm:$0x3]
      %v238 = vunpack.c.0.f8e4m3b11 %v237
      %v239 = vunpack.c.1.f8e4m3b11 %v237
      %v240 = vunpack.c.2.f8e4m3b11 %v237
      %v241 = vunpack.c.3.f8e4m3b11 %v237
      %v242 = vand.u32 2147483647, %v238
      %vm243 = vcmp.gt.f32.partialorder %v242, 29.0
      %vm244 = vcmp.ne.f32.partialorder %v238, %v238
      %v245 = vmul.f32 %v238, 16.0
      %v246 = vsel %vm244, -0.0, %v245
      %v247 = vsel %vm243, nan, %v246
      %v248 = vand.u32 2147483647, %v239
      %vm249 = vcmp.gt.f32.partialorder %v248, 29.0
      %vm250 = vcmp.ne.f32.partialorder %v239, %v239
      %v251 = vmul.f32 %v239, 16.0
      %v252 = vsel %vm250, -0.0, %v251
      %v253 = vsel %vm249, nan, %v252
      %v254 = vand.u32 2147483647, %v240
      %vm255 = vcmp.gt.f32.partialorder %v254, 29.0
      %vm256 = vcmp.ne.f32.partialorder %v240, %v240
      %v257 = vmul.f32 %v240, 16.0
      %v258 = vsel %vm256, -0.0, %v257
      %v259 = vsel %vm255, nan, %v258
      %v260 = vand.u32 2147483647, %v241
      %vm261 = vcmp.gt.f32.partialorder %v260, 29.0
      %vm262 = vcmp.ne.f32.partialorder %v241, %v241
      %v263 = vmul.f32 %v241, 16.0
      %v264 = vsel %vm262, -0.0, %v263
      %v265 = vsel %vm261, nan, %v264
    %v266 = vpack.c.bf16 %v247, %v216
    %v283 = vunpack.c.l.b16 %v88
    %v284 = vunpack.c.l.b16 %v89
    %v285 = vunpack.c.l.b16 %v90
    %v286 = vunpack.c.l.b16 %v91
    %v287 = vunpack.c.l.b16 %v92
    %v288 = vunpack.c.l.b16 %v93
    %v289 = vunpack.c.l.b16 %v94
    %v290 = vunpack.c.l.b16 %v95
    %v291 = vunpack.c.l.b16 %v96
    %v292 = vunpack.c.l.b16 %v97
    %v293 = vunpack.c.l.b16 %v98
    %v294 = vunpack.c.l.b16 %v99
    %v295 = vunpack.c.l.b16 %v100
    %v296 = vunpack.c.l.b16 %v101
    %v297 = vunpack.c.l.b16 %v102
    %v298 = vunpack.c.l.b16 %v103
    %v299 = vpack.c.b16 %v284, %v283
    %v300 = vpack.c.b16 %v286, %v285
    %v301 = vpack.c.b16 %v288, %v287
    %v302 = vpack.c.b16 %v290, %v289
    %v303 = vpack.c.b16 %v292, %v291
    %v304 = vpack.c.b16 %v294, %v293
    %v305 = vpack.c.b16 %v296, %v295
    %v306 = vpack.c.b16 %v298, %v297
    %315 = vmatprep.subr.bf16.mxu0 0
    %316 = vmatpush1.bf16.msra.mxu0 %v306
    %317 = vmatprep.subr.bf16.mxu0 0
    %318 = vmatpush1.bf16.msra.mxu0 %v305
    %319 = vmatprep.subr.bf16.mxu0 0
    %320 = vmatpush1.bf16.msra.mxu0 %v304
    %321 = vmatprep.subr.bf16.mxu0 0
    %322 = vmatpush1.bf16.msra.mxu0 %v303
    %323 = vmatprep.subr.bf16.mxu0 0
    %324 = vmatpush1.bf16.msra.mxu0 %v302
    %325 = vmatprep.subr.bf16.mxu0 0
    %326 = vmatpush1.bf16.msra.mxu0 %v301
    %327 = vmatprep.subr.bf16.mxu0 0
    %328 = vmatpush1.bf16.msra.mxu0 %v300
    %329 = vmatprep.subr.bf16.mxu0 0
    %330 = vmatpush1.bf16.msra.mxu0 %v299
    %331 = vmatprep.subr.bf16.mxu0 0
    %332 = vmatpush2.bf16.msra.mxu0 0
    %333 = vmatprep.subr.bf16.mxu0 0
    %334 = vmatpush2.bf16.msra.mxu0 0
    %335 = vmatprep.subr.bf16.mxu0 0
    %336 = vmatpush2.bf16.msra.mxu0 0
    %337 = vmatprep.subr.bf16.mxu0 0
    %338 = vmatpush2.bf16.msra.mxu0 0
    %339 = vmatprep.subr.bf16.mxu0 0
    %340 = vmatpush2.bf16.msra.mxu0 0
    %341 = vmatprep.subr.bf16.mxu0 0
    %342 = vmatpush2.bf16.msra.mxu0 0
    %343 = vmatprep.subr.bf16.mxu0 0
    %344 = vmatpush2.bf16.msra.mxu0 0
    %345 = vmatprep.subr.bf16.mxu0 0
    %346 = vmatpush2.bf16.msra.mxu0 0
    %347 = vmatprep.mubr.bf16.mxu0 0
    %348 = vmatmul.mubr.bf16.gmra.mxu0 %v266
    %v349 = vpop.f32.mrf.mxu0
    %v350 = vadd.f32 0.0, %v349
    %v351 = vpop.f32.mrf.mxu0
    %v352 = vpop.f32.mrf.mxu0
    %v353 = vadd.f32 0.0, %v352
    %v354 = vpop.f32.mrf.mxu0
    %355 = vdwg.mxu0
    %v356 = vstv %s141
    %v357 = vmul.f32 %v148, %v356
    %v358 = vmul.f32 %v149, %v356
    %v359 = vmul.f32 %v350, %v357
    %v360 = vmul.f32 %v353, %v358
    %v361 = vadd.f32 %v359, %v77
    %v362 = vadd.f32 %v360, %v84
    %v363 = vmul.f32 %v361, %v361
    %v364 = vmul.f32 %v362, %v362
    %365 = vadd.xlane.f32.xlu0 %v363
    %v366 = vpop.xlane.xlu0 %365
    %367 = vadd.xlane.f32.xlu0 %v364
    %v368 = vpop.xlane.xlu0 %367
    %v369 = vmul.f32 %v366, %v126
    %v370 = vmul.f32 %v368, %v126
    %v371 = vadd.f32 %v369, 1e-06
    %v372 = vadd.f32 %v370, 1e-06
    %v373 = vrsqrt.pop %v371
    %v374 = vrsqrt.pop %v372
    %v375 = vmul.f32 %v361, %v373
    %v376 = vmul.f32 %v362, %v374
    %v377 = vlaneseq
    %v378 = vshrl.u32 %v377, 7
    %v379 = vsub.s32 0, %v378
    %v380 = vrot.slane %v86, %v379
    %v381 = vmul.f32 %v375, %v380
    %v382 = vmul.f32 %v376, %v380
    %s383 = sld [smem:[#allocation2 + $0x1]]
    %v384 = vand.u32 2147483647, %v381
    %v385 = vand.u32 2147483647, %v382
    %386 = vmax.xlane.f32.xlu0 %v384
    %v387 = vpop.xlane.xlu0 %386
    %388 = vmax.xlane.f32.xlu0 %v385
    %v389 = vpop.xlane.xlu0 %388
    %v390 = vmax.f32 %v387, 1e-12
    %v391 = vmax.f32 %v389, 1e-12
    %v392 = vrcp.pop %v390
    %v393 = vmul.f32 448.0, %v392
    %v394 = vrcp.pop %v391
    %v395 = vmul.f32 448.0, %v394
    %v396 = vmul.f32 %v381, %v393
    %v397 = vmul.f32 %v382, %v395
    %v398 = vmax.f32 %v396, -448.0
    %v399 = vmax.f32 %v397, -448.0
    %v400 = vmin.f32 %v398, 448.0
    %v401 = vmin.f32 %v399, 448.0
    %v402 = vand.u32 2147483647, %v400
    %v403 = vand.u32 %v400, 2147483648
    %v405 = vadd.f32 1182793728, %v402
    %v407 = vsub.s32 %v405, 1182793728
    %v408 = vshrl.u32 %v400, 20
    %v409 = vand.u32 %v408, 1
    %v410 = vadd.s32 %v402, 3288858623
    %v411 = vadd.s32 %v410, %v409
    %v412 = vshrl.u32 %v411, 20
    %vm413 = vcmp.lt.s32.totalorder %v402, 1015021568
    %v414 = vsel %vm413, %v407, %v412
    %vm415 = vcmp.ge.s32.totalorder %v402, 1139277825
    %v416 = vsel %vm415, 127, %v414
    %vm417 = vcmp.ne.f32.partialorder %v400, %v400
    %v418 = vsel %vm417, 127, %v416
    %v419 = vshrl.u32 %v403, 24
    %v420 = vor.u32 %v418, %v419
    %v421 = vor.u32 %v420, 4294967040
    %v423 = vand.u32 2147483647, %v401
    %v424 = vand.u32 %v401, 2147483648
    %v426 = vadd.f32 1182793728, %v423
    %v428 = vsub.s32 %v426, 1182793728
    %v429 = vshrl.u32 %v401, 20
    %v430 = vand.u32 %v429, 1
    %v431 = vadd.s32 %v423, 3288858623
    %v432 = vadd.s32 %v431, %v430
    %v433 = vshrl.u32 %v432, 20
    %vm434 = vcmp.lt.s32.totalorder %v423, 1015021568
    %v435 = vsel %vm434, %v428, %v433
    %vm436 = vcmp.ge.s32.totalorder %v423, 1139277825
    %v437 = vsel %vm436, 127, %v435
    %vm438 = vcmp.ne.f32.partialorder %v401, %v401
    %v439 = vsel %vm438, 127, %v437
    %v440 = vshrl.u32 %v424, 24
    %v441 = vor.u32 %v439, %v440
    %v442 = vor.u32 %v441, 4294967040
    %v444 = vpack.c.b16 %v442, %v421
    %v445 = vpack.c.b8 %v444, %v444
    $region36: #{tpu_custom_call.1} parent=1
      #allocation13 [shape = 'u8[4096]{0}', space=vmem, size = 0x1000, scoped, tag = 'scoped memory for tpu_custom_call.1']
      %447 = vst [vmem:[#allocation13] sm:$0xff] %v445
      %v448 = vld [vmem:[#allocation13] sm:$0x3]
      %v449 = vunpack.c.0.f8e4m3b11 %v448
      %v450 = vunpack.c.1.f8e4m3b11 %v448
      %v451 = vunpack.c.2.f8e4m3b11 %v448
      %v452 = vunpack.c.3.f8e4m3b11 %v448
      %v453 = vand.u32 2147483647, %v449
      %vm454 = vcmp.gt.f32.partialorder %v453, 29.0
      %vm455 = vcmp.ne.f32.partialorder %v449, %v449
      %v456 = vmul.f32 %v449, 16.0
      %v457 = vsel %vm455, -0.0, %v456
      %v458 = vsel %vm454, nan, %v457
      %v459 = vand.u32 2147483647, %v450
      %vm460 = vcmp.gt.f32.partialorder %v459, 29.0
      %vm461 = vcmp.ne.f32.partialorder %v450, %v450
      %v462 = vmul.f32 %v450, 16.0
      %v463 = vsel %vm461, -0.0, %v462
      %v464 = vsel %vm460, nan, %v463
      %v465 = vand.u32 2147483647, %v451
      %vm466 = vcmp.gt.f32.partialorder %v465, 29.0
      %vm467 = vcmp.ne.f32.partialorder %v451, %v451
      %v468 = vmul.f32 %v451, 16.0
      %v469 = vsel %vm467, -0.0, %v468
      %v470 = vsel %vm466, nan, %v469
      %v471 = vand.u32 2147483647, %v452
      %vm472 = vcmp.gt.f32.partialorder %v471, 29.0
      %vm473 = vcmp.ne.f32.partialorder %v452, %v452
      %v474 = vmul.f32 %v452, 16.0
      %v475 = vsel %vm473, -0.0, %v474
      %v476 = vsel %vm472, nan, %v475
    $region37: #{tpu_custom_call.1} parent=1
      #allocation14 [shape = 'u8[4096]{0}', space=vmem, size = 0x1000, scoped, tag = 'scoped memory for tpu_custom_call.1']
      %477 = vst [vmem:[#allocation14] sm:$0xff] %v445
      %s478 = scalar_lea.vmem [#allocation14], 2
      %v479 = vld [vmem:[%s478] sm:$0x3]
      %v480 = vunpack.c.0.f8e4m3b11 %v479
      %v481 = vunpack.c.1.f8e4m3b11 %v479
      %v482 = vunpack.c.2.f8e4m3b11 %v479
      %v483 = vunpack.c.3.f8e4m3b11 %v479
      %v484 = vand.u32 2147483647, %v480
      %vm485 = vcmp.gt.f32.partialorder %v484, 29.0
      %vm486 = vcmp.ne.f32.partialorder %v480, %v480
      %v487 = vmul.f32 %v480, 16.0
      %v488 = vsel %vm486, -0.0, %v487
      %v489 = vsel %vm485, nan, %v488
      %v490 = vand.u32 2147483647, %v481
      %vm491 = vcmp.gt.f32.partialorder %v490, 29.0
      %vm492 = vcmp.ne.f32.partialorder %v481, %v481
      %v493 = vmul.f32 %v481, 16.0
      %v494 = vsel %vm492, -0.0, %v493
      %v495 = vsel %vm491, nan, %v494
      %v496 = vand.u32 2147483647, %v482
      %vm497 = vcmp.gt.f32.partialorder %v496, 29.0
      %vm498 = vcmp.ne.f32.partialorder %v482, %v482
      %v499 = vmul.f32 %v482, 16.0
      %v500 = vsel %vm498, -0.0, %v499
      %v501 = vsel %vm497, nan, %v500
      %v502 = vand.u32 2147483647, %v483
      %vm503 = vcmp.gt.f32.partialorder %v502, 29.0
      %vm504 = vcmp.ne.f32.partialorder %v483, %v483
      %v505 = vmul.f32 %v483, 16.0
      %v506 = vsel %vm504, -0.0, %v505
      %v507 = vsel %vm503, nan, %v506
    %v508 = vpack.c.bf16 %v489, %v458
    %v525 = vunpack.c.l.b16 %v104
    %v526 = vunpack.c.l.b16 %v105
    %v527 = vunpack.c.l.b16 %v106
    %v528 = vunpack.c.l.b16 %v107
    %v529 = vunpack.c.l.b16 %v108
    %v530 = vunpack.c.l.b16 %v109
    %v531 = vunpack.c.l.b16 %v110
    %v532 = vunpack.c.l.b16 %v111
    %v533 = vunpack.c.l.b16 %v112
    %v534 = vunpack.c.l.b16 %v113
    %v535 = vunpack.c.l.b16 %v114
    %v536 = vunpack.c.l.b16 %v115
    %v537 = vunpack.c.l.b16 %v116
    %v538 = vunpack.c.l.b16 %v117
    %v539 = vunpack.c.l.b16 %v118
    %v540 = vunpack.c.l.b16 %v119
    %v541 = vpack.c.b16 %v526, %v525
    %v542 = vpack.c.b16 %v528, %v527
    %v543 = vpack.c.b16 %v530, %v529
    %v544 = vpack.c.b16 %v532, %v531
    %v545 = vpack.c.b16 %v534, %v533
    %v546 = vpack.c.b16 %v536, %v535
    %v547 = vpack.c.b16 %v538, %v537
    %v548 = vpack.c.b16 %v540, %v539
    %557 = vmatprep.subr.bf16.mxu0 0
    %558 = vmatpush1.bf16.msra.mxu0 %v548
    %559 = vmatprep.subr.bf16.mxu0 0
    %560 = vmatpush1.bf16.msra.mxu0 %v547
    %561 = vmatprep.subr.bf16.mxu0 0
    %562 = vmatpush1.bf16.msra.mxu0 %v546
    %563 = vmatprep.subr.bf16.mxu0 0
    %564 = vmatpush1.bf16.msra.mxu0 %v545
    %565 = vmatprep.subr.bf16.mxu0 0
    %566 = vmatpush1.bf16.msra.mxu0 %v544
    %567 = vmatprep.subr.bf16.mxu0 0
    %568 = vmatpush1.bf16.msra.mxu0 %v543
    %569 = vmatprep.subr.bf16.mxu0 0
    %570 = vmatpush1.bf16.msra.mxu0 %v542
    %571 = vmatprep.subr.bf16.mxu0 0
    %572 = vmatpush1.bf16.msra.mxu0 %v541
    %573 = vmatprep.subr.bf16.mxu0 0
    %574 = vmatpush2.bf16.msra.mxu0 0
    %575 = vmatprep.subr.bf16.mxu0 0
    %576 = vmatpush2.bf16.msra.mxu0 0
    %577 = vmatprep.subr.bf16.mxu0 0
    %578 = vmatpush2.bf16.msra.mxu0 0
    %579 = vmatprep.subr.bf16.mxu0 0
    %580 = vmatpush2.bf16.msra.mxu0 0
    %581 = vmatprep.subr.bf16.mxu0 0
    %582 = vmatpush2.bf16.msra.mxu0 0
    %583 = vmatprep.subr.bf16.mxu0 0
    %584 = vmatpush2.bf16.msra.mxu0 0
    %585 = vmatprep.subr.bf16.mxu0 0
    %586 = vmatpush2.bf16.msra.mxu0 0
    %587 = vmatprep.subr.bf16.mxu0 0
    %588 = vmatpush2.bf16.msra.mxu0 0
    %589 = vmatprep.mubr.bf16.mxu0 0
    %590 = vmatmul.mubr.bf16.gmra.mxu0 %v508
    %v591 = vpop.f32.mrf.mxu0
    %v592 = vadd.f32 0.0, %v591
    %v593 = vpop.f32.mrf.mxu0
    %v594 = vpop.f32.mrf.mxu0
    %v595 = vadd.f32 0.0, %v594
    %v596 = vpop.f32.mrf.mxu0
    %597 = vdwg.mxu0
    %v598 = vstv %s383
    %v599 = vmul.f32 %v390, %v598
    %v600 = vmul.f32 %v391, %v598
    %v601 = vmul.f32 %v592, %v599
    %v602 = vmul.f32 %v595, %v600
    %v603 = vadd.f32 %v601, %v361
    %v604 = vadd.f32 %v602, %v362
    %v605 = vmul.f32 %v603, %v603
    %v606 = vmul.f32 %v604, %v604
    %607 = vadd.xlane.f32.xlu0 %v605
    %v608 = vpop.xlane.xlu0 %607
    %609 = vadd.xlane.f32.xlu0 %v606
    %v610 = vpop.xlane.xlu0 %609
    %v611 = vmul.f32 %v608, %v126
    %v612 = vmul.f32 %v610, %v126
    %v613 = vadd.f32 %v611, 1e-06
    %v614 = vadd.f32 %v612, 1e-06
    %v615 = vrsqrt.pop %v613
    %v616 = vrsqrt.pop %v614
    %v617 = vmul.f32 %v603, %v615
    %v618 = vmul.f32 %v604, %v616
    %v619 = vlaneseq
    %v620 = vshrl.u32 %v619, 7
    %v621 = vsub.s32 0, %v620
    %v622 = vrot.slane %v87, %v621
    %v623 = vmul.f32 %v617, %v622
    %v624 = vmul.f32 %v618, %v622
    %625 = vst [vmem:[#allocation10] sm:$0xff] %v623
    %626 = vst [vmem:[#allocation10 + $0x8] sm:$0xff] %v624
    // Predicated region
    $region38: #{tpu_custom_call.1} parent=1 // pred_check
      _
    $region39: #{tpu_custom_call.1} parent=1 // pred_check_branch
      %628 = sbr.rel (0) target = $region41
    $region40: #{tpu_custom_call.1} parent=1 // pred_region
      %s630 = ssub.s32 256, 256
      %631 = vsyncadd [#allocation4], %s630
      %s632 = sshll.u32 [#allocation10], 4
      %s633 = int_to_ptr.vmem [resolvable:$true] %s632
      %638 = dma.vmem_to_hbm [thread:$0]  %s633, 256, %s4, [#allocation4], 128, 128, 8
    $region41: #{tpu_custom_call.1} parent=1 // pred_fallthru
      _
    // Predicated region
    $region42: #{tpu_custom_call.1} parent=1 // pred_check
      _
    $region43: #{tpu_custom_call.1} parent=1 // pred_check_branch
      %640 = sbr.rel (0) target = $region45
    $region44: #{tpu_custom_call.1} parent=1 // pred_region
      %641 = dma.done [#allocation4], 256
    $region45: #{tpu_custom_call.1} parent=1 // pred_fallthru
      _
    %642 = vsyncpa [#allocation3], 1
    %643 = vsyncpa [#allocation8], 1
    %644 = vsyncpa [#allocation4], 1
    %645 = vsyncpa [#allocation5], 1

</llo_original>
